<compile_context>
chip_gen: v5e
topology: v5e:2x2
jax: 0.10.0
libtpu: 0.0.40
codegen_flags: <defaults>
</compile_context>

<pallas_src>
import jax
import jax.numpy as jnp
from jax.experimental import pallas as pl
from jax.experimental.pallas import tpu as pltpu


def _make_pose_criterion_kernel(n, tn, n_blocks):
    needs_mask = (n % tn) != 0

    def kernel(sax_ref, saq_ref, pred_ref, targ_ref, loss_ref, acc_ref):
        k = pl.program_id(0)

        @pl.when(k == 0)
        def _init():
            acc_ref[...] = jnp.zeros_like(acc_ref)

        # Stream one (7, tn) tile; diff/square in f32 on the VPU.
        diff = pred_ref[...].astype(jnp.float32) - targ_ref[...].astype(jnp.float32)
        sq = diff * diff                                        # (7, tn) f32

        if needs_mask:
            # Zero lanes beyond the true batch size N (partial last block).
            col = jax.lax.broadcasted_iota(jnp.int32, sq.shape, 1) + k * tn
            sq = jnp.where(col < n, sq, 0.0)

        # One lane-reduce per pose row -> (7, 1); accumulate across grid steps.
        acc_ref[...] += jnp.sum(sq, axis=1, keepdims=True)

        @pl.when(k == n_blocks - 1)
        def _finalize():
            accs = acc_ref[...]                                 # (7, 1) f32
            t_sum = jnp.sum(accs[:3, :])                        # translation rows 0:3
            q_sum = jnp.sum(accs[3:, :])                        # quaternion rows 3:7
            t_mse = t_sum * jnp.float32(1.0 / (n * 3))          # MSE(mean) over N*3
            q_mse = q_sum * jnp.float32(1.0 / (n * 4))          # MSE(mean) over N*4
            sax = sax_ref[0]
            saq = saq_ref[0]
            loss_ref[0] = (jnp.exp(-sax) * t_mse + sax
                           + jnp.exp(-saq) * q_mse + saq)

    return kernel


def pose_criterion(pred, targ, sax, saq, *, block_n=8192):
    """Pallas implementation of PoseCriterion.forward.

    pred/targ: (N, 7) arrays (float32 or bfloat16). sax/saq: scalars.
    Note: for tiny N the pure-JAX reference is cheaper than a kernel launch.
    """
    N, D = pred.shape
    assert D == 7, "pose must be N x 7 (3 translation + 4 quaternion)"
    assert targ.shape == (N, D)

    # Lane-dense layout: batch on lanes (last axis).
    pred_t = jnp.transpose(pred)            # (7, N)
    targ_t = jnp.transpose(targ)

    # Tile N: a single full-array block when it fits, else 128-aligned tiles
    # of block_n with in-kernel masking of the partial last tile.
    tn = N if N <= block_n else block_n
    n_blocks = pl.cdiv(N, tn)

    sax_arr = jnp.asarray(sax, jnp.float32).reshape((1,))
    saq_arr = jnp.asarray(saq, jnp.float32).reshape((1,))

    kernel = _make_pose_criterion_kernel(N, tn, n_blocks)

    out = pl.pallas_call(
        kernel,
        out_shape=jax.ShapeDtypeStruct((1,), jnp.float32),
        grid_spec=pltpu.PrefetchScalarGridSpec(
            num_scalar_prefetch=0,
            grid=(n_blocks,),
            in_specs=[
                pl.BlockSpec(memory_space=pltpu.SMEM),           # sax
                pl.BlockSpec(memory_space=pltpu.SMEM),           # saq
                pl.BlockSpec((7, tn), lambda k: (0, k)),         # pred (7, N)
                pl.BlockSpec((7, tn), lambda k: (0, k)),         # targ (7, N)
            ],
            out_specs=pl.BlockSpec(memory_space=pltpu.SMEM),     # scalar loss
            scratch_shapes=[pltpu.VMEM((7, 1), jnp.float32)],    # per-row sums
        ),
        compiler_params=pltpu.CompilerParams(
            dimension_semantics=("arbitrary",),                  # reduction axis
        ),
    )(sax_arr, saq_arr, pred_t, targ_t)
    # TODO(synk): on v7x, add a leading "parallel" grid axis with two partial
    # sums so both TensorCores stream HBM; kept single-core for simplicity.
    return out[0]


def _reference(pred, targ, sax, saq):
    pred = pred.astype(jnp.float32)
    targ = targ.astype(jnp.float32)
    t_mse = jnp.mean((pred[:, :3] - targ[:, :3]) ** 2)
    q_mse = jnp.mean((pred[:, 3:] - targ[:, 3:]) ** 2)
    return jnp.exp(-sax) * t_mse + sax + jnp.exp(-saq) * q_mse + saq


if __name__ == "__main__":
    key = jax.random.PRNGKey(0)
    k1, k2, k3, k4 = jax.random.split(key, 4)

    sax = jnp.float32(0.0)
    saq = jnp.float32(0.0)

    # Small module-consistent case (N x 7 poses), single-block path, f32.
    N = 8
    pred = jax.random.normal(k1, (N, 7), dtype=jnp.float32)
    targ = jax.random.normal(k2, (N, 7), dtype=jnp.float32)
    loss = pose_criterion(pred, targ, sax, saq)
    jax.block_until_ready(loss)
    ref = _reference(pred, targ, sax, saq)
    assert jnp.allclose(loss, ref, atol=1e-5, rtol=1e-5), (loss, ref)

    # Multi-block path with a partial last tile (exercises masking +
    # grid accumulation), streamed as bf16 with in-kernel f32 math.
    N2 = 300
    pred2 = jax.random.normal(k3, (N2, 7), dtype=jnp.float32).astype(jnp.bfloat16)
    targ2 = jax.random.normal(k4, (N2, 7), dtype=jnp.float32).astype(jnp.bfloat16)
    sax2 = jnp.float32(0.3)
    saq2 = jnp.float32(-0.2)
    loss2 = pose_criterion(pred2, targ2, sax2, saq2, block_n=128)
    jax.block_until_ready(loss2)
    ref2 = _reference(pred2, targ2, sax2, saq2)
    assert jnp.allclose(loss2, ref2, atol=1e-5, rtol=1e-5), (loss2, ref2)

    print("KERNEL_OK")
</pallas_src>

<mosaic_0001>
module attributes {stable_mosaic.version = 11 : i64} {
  func.func @kernel(%arg0: i32, %arg1: memref<1xf32, #tpu.memory_space<smem>>, %arg2: memref<1xf32, #tpu.memory_space<smem>>, %arg3: memref<7x8xf32, #tpu.memory_space<vmem>>, %arg4: memref<7x8xf32, #tpu.memory_space<vmem>>, %arg5: memref<1xf32, #tpu.memory_space<smem>>, %arg6: memref<7x1xf32, #tpu.memory_space<vmem>>) attributes {dimension_semantics = [#tpu.dimension_semantics<arbitrary>], iteration_bounds = array<i64: 1>, scalar_prefetch = 0 : i64, scratch_operands = 1 : i64, tpu.core_type = #tpu.core_type<tc>, window_params = [{transform_indices = @transform_0, window_bounds = array<i64: 1>}, {transform_indices = @transform_1, window_bounds = array<i64: 1>}, {transform_indices = @transform_2, window_bounds = array<i64: 7, 8>}, {transform_indices = @transform_3, window_bounds = array<i64: 7, 8>}, {transform_indices = @transform_4, window_bounds = array<i64: 1>}]} {
    %c0_i32 = arith.constant 0 : i32
    %0 = arith.cmpi eq, %arg0, %c0_i32 : i32
    %1 = arith.extui %0 : i1 to i32
    %c0_i32_0 = arith.constant 0 : i32
    %2 = arith.cmpi ne, %1, %c0_i32_0 : i32
    scf.if %2 {
      %cst_10 = arith.constant 0.000000e+00 : f32
      %15 = vector.broadcast %cst_10 : f32 to vector<7x1xf32>
      %c0_11 = arith.constant 0 : index
      %c0_12 = arith.constant 0 : index
      %16 = vector.load %arg6[%c0_11, %c0_12] : memref<7x1xf32, #tpu.memory_space<vmem>>, vector<7x1xf32>
      tpu.vector_store %arg6[%c0_11, %c0_12], %15 {strides = array<i32>} : memref<7x1xf32, #tpu.memory_space<vmem>>, vector<7x1xf32>,
    } else {
    }
    %c0 = arith.constant 0 : index
    %c0_1 = arith.constant 0 : index
    %3 = vector.load %arg3[%c0, %c0_1] : memref<7x8xf32, #tpu.memory_space<vmem>>, vector<7x8xf32>
    %c0_2 = arith.constant 0 : index
    %c0_3 = arith.constant 0 : index
    %4 = vector.load %arg4[%c0_2, %c0_3] : memref<7x8xf32, #tpu.memory_space<vmem>>, vector<7x8xf32>
    %5 = arith.subf %3, %4 : vector<7x8xf32>
    %6 = arith.mulf %5, %5 : vector<7x8xf32>
    %c0_4 = arith.constant 0 : index
    %c0_5 = arith.constant 0 : index
    %7 = vector.load %arg6[%c0_4, %c0_5] : memref<7x1xf32, #tpu.memory_space<vmem>>, vector<7x1xf32>
    %cst = arith.constant dense<0.000000e+00> : vector<7xf32>
    %8 = vector.multi_reduction <add>, %6, %cst [1] : vector<7x8xf32> to vector<7xf32>
    %9 = vector.shape_cast %8 : vector<7xf32> to vector<7x1xf32>
    %10 = arith.addf %7, %9 : vector<7x1xf32>
    %c0_6 = arith.constant 0 : index
    %c0_7 = arith.constant 0 : index
    %11 = vector.load %arg6[%c0_6, %c0_7] : memref<7x1xf32, #tpu.memory_space<vmem>>, vector<7x1xf32>
    tpu.vector_store %arg6[%c0_6, %c0_7], %10 {strides = array<i32>} : memref<7x1xf32, #tpu.memory_space<vmem>>, vector<7x1xf32>,
    %c0_i32_8 = arith.constant 0 : i32
    %12 = arith.cmpi eq, %arg0, %c0_i32_8 : i32
    %13 = arith.extui %12 : i1 to i32
    %c0_i32_9 = arith.constant 0 : i32
    %14 = arith.cmpi ne, %13, %c0_i32_9 : i32
    scf.if %14 {
      %c0_10 = arith.constant 0 : index
      %c0_11 = arith.constant 0 : index
      %15 = vector.load %arg6[%c0_10, %c0_11] : memref<7x1xf32, #tpu.memory_space<vmem>>, vector<7x1xf32>
      %16 = vector.extract_strided_slice %15 {offsets = [0, 0], sizes = [3, 1], strides = [1, 1]} : vector<7x1xf32> to vector<3x1xf32>
      %17 = vector.shape_cast %16 : vector<3x1xf32> to vector<1x3x1xf32>
      %cst_12 = arith.constant dense<0.000000e+00> : vector<1xf32>
      %18 = vector.multi_reduction <add>, %17, %cst_12 [1, 2] : vector<1x3x1xf32> to vector<1xf32>
      %19 = vector.shape_cast %18 : vector<1xf32> to vector<1x1x1xf32>
      %20 = vector.extract %19[0, 0, 0] : f32 from vector<1x1x1xf32>
      %21 = vector.extract_strided_slice %15 {offsets = [3, 0], sizes = [4, 1], strides = [1, 1]} : vector<7x1xf32> to vector<4x1xf32>
      %22 = vector.shape_cast %21 : vector<4x1xf32> to vector<1x4x1xf32>
      %cst_13 = arith.constant dense<0.000000e+00> : vector<1xf32>
      %23 = vector.multi_reduction <add>, %22, %cst_13 [1, 2] : vector<1x4x1xf32> to vector<1xf32>
      %24 = vector.shape_cast %23 : vector<1xf32> to vector<1x1x1xf32>
      %25 = vector.extract %24[0, 0, 0] : f32 from vector<1x1x1xf32>
      %cst_14 = arith.constant 0.0416666679 : f32
      %26 = arith.mulf %20, %cst_14 : f32
      %cst_15 = arith.constant 3.125000e-02 : f32
      %27 = arith.mulf %25, %cst_15 : f32
      %c0_16 = arith.constant 0 : index
      %28 = memref.load %arg1[%c0_16] : memref<1xf32, #tpu.memory_space<smem>>
      %c0_17 = arith.constant 0 : index
      %29 = memref.load %arg2[%c0_17] : memref<1xf32, #tpu.memory_space<smem>>
      %cst_18 = arith.constant 0.000000e+00 : f32
      %30 = arith.subf %cst_18, %28 : f32
      %31 = math.exp %30 : f32
      %32 = arith.mulf %31, %26 : f32
      %33 = arith.addf %32, %28 : f32
      %cst_19 = arith.constant 0.000000e+00 : f32
      %34 = arith.subf %cst_19, %29 : f32
      %35 = math.exp %34 : f32
      %36 = arith.mulf %35, %27 : f32
      %37 = arith.addf %33, %36 : f32
      %38 = arith.addf %37, %29 : f32
      %c0_20 = arith.constant 0 : index
      %39 = memref.load %arg5[%c0_20] : memref<1xf32, #tpu.memory_space<smem>>
      memref.store %38, %arg5[%c0_20] : memref<1xf32, #tpu.memory_space<smem>>
    } else {
    }
    return
  }
  func.func @transform_0(%arg0: i32) -> i32 {
    %c0_i32 = arith.constant 0 : i32
    %c0_i32_0 = arith.constant 0 : i32
    return %c0_i32 : i32
  }
  func.func @transform_1(%arg0: i32) -> i32 {
    %c0_i32 = arith.constant 0 : i32
    %c0_i32_0 = arith.constant 0 : i32
    return %c0_i32 : i32
  }
  func.func @transform_2(%arg0: i32) -> (i32, i32) {
    %c0_i32 = arith.constant 0 : i32
    %c0_i32_0 = arith.constant 0 : i32
    return %c0_i32, %arg0 : i32, i32
  }
  func.func @transform_3(%arg0: i32) -> (i32, i32) {
    %c0_i32 = arith.constant 0 : i32
    %c0_i32_0 = arith.constant 0 : i32
    return %c0_i32, %arg0 : i32, i32
  }
  func.func @transform_4(%arg0: i32) -> i32 {
    %c0_i32 = arith.constant 0 : i32
    %c0_i32_0 = arith.constant 0 : i32
    return %c0_i32 : i32
  }
}

</mosaic_0001>

<llo_original>
// kernel: tpu_custom_call.1
$region0: #{tpu_custom_call.1}
  #allocation0 [shape = 'u32[]', space=smem, size = 0x4, offset = 0x4, fixed_abs, tag = 'smem constant byte address 0x4 - core index']
  #allocation1 [shape = 'u32[72,128]{1,0:T(1,128)}', space=vmem, size = 0x9000, scoped, tag = 'internal scratch']
  #allocation2 [shape = 'f32[7,1]{1,0:T(8,128)}', space=vmem, size = 0x1000, scoped, tag = 'scratch operand']
  #allocation3 [shape = 'f32[1]{0:T(128)S(6)}', space=smem, size = 0x200, scoped, tag = 'scoped memory for tpu_custom_call.1']
  #allocation4 [shape = 'f32[1]{0:T(128)S(6)}', space=smem, size = 0x200, scoped, tag = 'scoped memory for tpu_custom_call.1']
  %s0 = inlined_call_operand.<no memory space> [shape: f32[1], index: 0, kind: input, shape index: {}]
  %s1 = inlined_call_operand.<no memory space> [shape: f32[1], index: 1, kind: input, shape index: {}]
  %s2 = inlined_call_operand.hbm [shape: f32[7,8], index: 2, kind: input, shape index: {}]
  %s3 = inlined_call_operand.hbm [shape: f32[7,8], index: 3, kind: input, shape index: {}]
  %s4 = inlined_call_operand.hbm [shape: f32[1], index: 4, kind: output, shape index: {}]
  %s5 = sld [smem:[#allocation0]]
  $region42: #{tpu_custom_call.1} parent=0
    _
  %s7 = ssub.s32 1, %s5
  %s8 = scalar_select 0, %s7, %s5
  %9 = sst [smem:[#allocation3]] %s0
  %10 = sst [smem:[#allocation4]] %s1
  $region1: #{tpu_custom_call.1} parent=0
    #allocation5 [shape = 'u8[4096]{0}', space=vmem, size = 0x1000, scoped, tag = 'input window, operand 2, single buffered']
    #allocation6 [shape = 's32[1]{0}', space=sflag, size = 0x4, scoped, tag = 'scoped memory for tpu_custom_call.1']
    #allocation7 [shape = 's32[1]{0}', space=sflag, size = 0x4, scoped, tag = 'scoped memory for tpu_custom_call.1']
    #allocation8 [shape = 'u8[4096]{0}', space=vmem, size = 0x1000, scoped, tag = 'input window, operand 3, single buffered']
    #allocation9 [shape = 's32[1]{0}', space=sflag, size = 0x4, scoped, tag = 'scoped memory for tpu_custom_call.1']
    #allocation10 [shape = 'u8[512]{0}', space=smem, size = 0x200, scoped, tag = 'output window, operand 0, single buffered']
    %11 = vsyncpa [#allocation6], 0
    %12 = vsyncpa [#allocation9], 0
    %13 = vsyncpa [#allocation7], 0
    // Predicated region
    $region2: #{tpu_custom_call.1} parent=1 // pred_check
      _
    $region3: #{tpu_custom_call.1} parent=1 // pred_check_branch
      %15 = sbr.rel (0) target = $region5
    $region4: #{tpu_custom_call.1} parent=1 // pred_region
      _
    $region5: #{tpu_custom_call.1} parent=1 // pred_fallthru
      _
    // Predicated region
    $region6: #{tpu_custom_call.1} parent=1 // pred_check
      _
    $region7: #{tpu_custom_call.1} parent=1 // pred_check_branch
      %17 = sbr.rel (0) target = $region9
    $region8: #{tpu_custom_call.1} parent=1 // pred_region
      _
    $region9: #{tpu_custom_call.1} parent=1 // pred_fallthru
      _
    // Predicated region
    $region10: #{tpu_custom_call.1} parent=1 // pred_check
      _
    $region11: #{tpu_custom_call.1} parent=1 // pred_check_branch
      %19 = sbr.rel (0) target = $region13
    $region12: #{tpu_custom_call.1} parent=1 // pred_region
      %21 = vsyncadd [#allocation6], 0
      %s23 = sshll.u32 %s2, 4
      %s24 = int_to_ptr.hbm [resolvable:$true] %s23
      %s25 = sshll.u32 [#allocation5], 4
      %s26 = int_to_ptr.vmem [resolvable:$true] %s25
      %28 = dma.hbm_to_vmem [thread:$0]  %s24, 128, %s26, [#allocation6]
    $region13: #{tpu_custom_call.1} parent=1 // pred_fallthru
      _
    // Predicated region
    $region14: #{tpu_custom_call.1} parent=1 // pred_check
      _
    $region15: #{tpu_custom_call.1} parent=1 // pred_check_branch
      %30 = sbr.rel (0) target = $region17
    $region16: #{tpu_custom_call.1} parent=1 // pred_region
      %32 = vsyncadd [#allocation9], 0
      %s34 = sshll.u32 %s3, 4
      %s35 = int_to_ptr.hbm [resolvable:$true] %s34
      %s36 = sshll.u32 [#allocation8], 4
      %s37 = int_to_ptr.vmem [resolvable:$true] %s36
      %39 = dma.hbm_to_vmem [thread:$0]  %s35, 128, %s37, [#allocation9]
    $region17: #{tpu_custom_call.1} parent=1 // pred_fallthru
      _
    // Predicated region
    $region18: #{tpu_custom_call.1} parent=1 // pred_check
      _
    $region19: #{tpu_custom_call.1} parent=1 // pred_check_branch
      %41 = sbr.rel (0) target = $region21
    $region20: #{tpu_custom_call.1} parent=1 // pred_region
      %43 = dma.done [#allocation6], 128
    $region21: #{tpu_custom_call.1} parent=1 // pred_fallthru
      _
    // Predicated region
    $region22: #{tpu_custom_call.1} parent=1 // pred_check
      _
    $region23: #{tpu_custom_call.1} parent=1 // pred_check_branch
      %45 = sbr.rel (0) target = $region25
    $region24: #{tpu_custom_call.1} parent=1 // pred_region
      %47 = dma.done [#allocation9], 128
    $region25: #{tpu_custom_call.1} parent=1 // pred_fallthru
      _
    %p48 = scmp.eq.s32.totalorder 0, 0
    // Predicated region
    $region26: #{tpu_custom_call.1} parent=1 // pred_check
      %p49 = pneg %p48
    $region27: #{tpu_custom_call.1} parent=1 // pred_check_branch
      %51 = sbr.rel (%p49) target = $region29
    $region28: #{tpu_custom_call.1} parent=1 // pred_region
      %vm52 = vcmask 6144
      %53 = vst.msk [vmem:[#allocation2] sm:$0x7f] %vm52, 0.0
    $region29: #{tpu_custom_call.1} parent=1 // pred_fallthru
      _
    %v54 = vld [vmem:[#allocation5] sm:$0x7f]
    %v55 = vld [vmem:[#allocation8] sm:$0x7f]
    %v56 = vsub.f32 %v54, %v55
    %v57 = vmul.f32 %v56, %v56
    %v58 = vld [vmem:[#allocation2] sm:$0x7f]
    %vm59 = vcmask 63488
    %v60 = vsel %vm59, %v57, 0.0
    %61 = vadd.xlane.f32.xlu0 %v60
    %v62 = vpop.xlane.xlu0 %61
    %v63 = vadd.f32 %v58, %v62
    %vm64 = vcmask 6144
    %65 = vst.msk [vmem:[#allocation2] sm:$0x7f] %vm64, %v63
    // Predicated region
    $region30: #{tpu_custom_call.1} parent=1 // pred_check
      %p66 = pneg %p48
    $region31: #{tpu_custom_call.1} parent=1 // pred_check_branch
      %68 = sbr.rel (%p66) target = $region33
    $region32: #{tpu_custom_call.1} parent=1 // pred_region
      %v69 = vld [vmem:[#allocation2] sm:$0x7f]
      %vm70 = vcmask 2048
      %v71 = vsel %vm70, %v69, 0.0
      %72 = vadd.xlane.f32.xlu0 %v71
      %v73 = vpop.xlane.xlu0 %72
      %v74 = vrot.slane %v73, 4
      %v75 = vadd.f32 %v73, %v74
      %v76 = vrot.slane %v75, 2
      %v77 = vadd.f32 %v75, %v76
      %v78 = vrot.slane %v77, 1
      %v79 = vadd.f32 %v77, %v78
      %s80 = vtos %v79
      %v82 = vrot.slane %v69, 3
      %vm84 = vcmask 3072
      %v85 = vsel %vm84, %v82, 0.0
      %86 = vadd.xlane.f32.xlu0 %v85
      %v87 = vpop.xlane.xlu0 %86
      %v88 = vrot.slane %v87, 4
      %v89 = vadd.f32 %v87, %v88
      %v90 = vrot.slane %v89, 2
      %v91 = vadd.f32 %v89, %v90
      %v92 = vrot.slane %v91, 1
      %v93 = vadd.f32 %v91, %v92
      %s94 = vtos %v93
      %s95 = smul.f32 %s80, 0.041666668
      %s96 = smul.f32 %s94, 0.03125
      %s97 = sld [smem:[#allocation3]]
      %s98 = sld [smem:[#allocation4]]
      %s99 = ssub.f32 0.0, %s97
      %v100 = vstv %s99
      %v101 = vmul.f32 %v100, 1.442695
      %v102 = vpow.pop %v101
      %s103 = vtos %v102
      %s104 = smul.f32 %s103, %s95
      %s105 = sadd.f32 %s104, %s97
      %s106 = ssub.f32 0.0, %s98
      %v107 = vstv %s106
      %v108 = vmul.f32 %v107, 1.442695
      %v109 = vpow.pop %v108
      %s110 = vtos %v109
      %s111 = smul.f32 %s110, %s96
      %s112 = sadd.f32 %s105, %s111
      %s113 = sadd.f32 %s112, %s98
      %s114 = scalar_lea.smem [#allocation10], 0
      %115 = sst [smem:[%s114]] %s113
    $region33: #{tpu_custom_call.1} parent=1 // pred_fallthru
      _
    // Predicated region
    $region34: #{tpu_custom_call.1} parent=1 // pred_check
      _
    $region35: #{tpu_custom_call.1} parent=1 // pred_check_branch
      %117 = sbr.rel (0) target = $region37
    $region36: #{tpu_custom_call.1} parent=1 // pred_region
      %119 = vsyncadd [#allocation7], 0
      %s121 = sshll.u32 %s4, 4
      %s122 = int_to_ptr.hbm [resolvable:$true] %s121
      %124 = dma.smem_to_hbm [#allocation10], 16, %s122, [#allocation7]
    $region37: #{tpu_custom_call.1} parent=1 // pred_fallthru
      _
    // Predicated region
    $region38: #{tpu_custom_call.1} parent=1 // pred_check
      _
    $region39: #{tpu_custom_call.1} parent=1 // pred_check_branch
      %126 = sbr.rel (0) target = $region41
    $region40: #{tpu_custom_call.1} parent=1 // pred_region
      %128 = dma.done [#allocation7], 16
    $region41: #{tpu_custom_call.1} parent=1 // pred_fallthru
      _
    %129 = sfence
    %130 = vsyncpa [#allocation6], 1
    %131 = vsyncpa [#allocation9], 1
    %132 = vsyncpa [#allocation7], 1

</llo_original>
